<compile_context>
chip_gen: v7x
topology: tpu7x:2x2x1
jax: 0.10.0
libtpu: 0.0.40
codegen_flags: <defaults>
</compile_context>

<pallas_src>
import jax
import jax.numpy as jnp
from jax import lax
from jax.experimental import pallas as pl
from jax.experimental.pallas import tpu as pltpu


# Fixed layer sizes of the PyTorch module.
_H1, _H2, _H3, _HO = 16, 32, 16, 1
# Row offsets of each layer inside the packed weight / bias arrays.
_R1, _R2, _R3, _R4 = 0, _H1, _H1 + _H2, _H1 + _H2 + _H3          # 0, 16, 48, 64
_ROWS = _H1 + _H2 + _H3 + _HO                                     # 65
_CHUNK = 512   # lanes per inner step: keeps [16/32, chunk] activations in vregs


def _round_up(n, m):
    return ((n + m - 1) // m) * m


def _make_kernel(num_features, n_chunks):
    f = num_features

    def kernel(x_ref, wp_ref, bp_ref, o_ref):
        # Packed params are tiny; load them once per grid step (hoisted out of
        # the chunk loop).
        w1 = wp_ref[_R1:_R1 + _H1, 0:f]
        w2 = wp_ref[_R2:_R2 + _H2, 0:_H1]
        w3 = wp_ref[_R3:_R3 + _H3, 0:_H2]
        w4 = wp_ref[_R4:_R4 + _HO, 0:_H3]
        b1 = bp_ref[_R1:_R1 + _H1, :]
        b2 = bp_ref[_R2:_R2 + _H2, :]
        b3 = bp_ref[_R3:_R3 + _H3, :]
        b4 = bp_ref[_R4:_R4 + _HO, :]

        # No loop-carried state -> fully unrolled static loop (equivalent to
        # lax.fori_loop(..., unroll=True)) with static slice offsets.
        for c in range(n_chunks):
            lo, hi = c * _CHUNK, (c + 1) * _CHUNK
            xb = x_ref[lo:hi, :]                              # [chunk, F] (batch-major)
            # h1 = W1 @ xb^T : contract the feature axis of both operands so
            # the batch lands on lanes without any explicit transpose.
            h = lax.dot_general(w1, xb, (((1,), (1,)), ((), ())),
                                preferred_element_type=jnp.float32) + b1   # [16, chunk]
            h = jnp.maximum(h, 0.0)
            h = jnp.dot(w2, h, preferred_element_type=jnp.float32) + b2    # [32, chunk]
            h = jnp.maximum(h, 0.0)
            h = jnp.dot(w3, h, preferred_element_type=jnp.float32) + b3    # [16, chunk]
            h = jnp.maximum(h, 0.0)
            y = jnp.dot(w4, h, preferred_element_type=jnp.float32) + b4    # [1, chunk]
            o_ref[:, lo:hi] = y.astype(o_ref.dtype)           # lane-dense store

    return kernel


def _vmem_capacity_bytes():
    try:
        cap = int(getattr(pltpu.get_tpu_info(), "vmem_capacity_bytes", 0))
        if cap > 0:
            return cap
    except Exception:
        pass
    return 64 * 1024 * 1024       # conservative default (v7x per-core VMEM)


def _pick_batch_tile(batch, num_features, max_tile):
    # VMEM footprint of one x block: the minor dim (F) pads to 128 lanes.
    bytes_per_row = _round_up(max(num_features, 1), 128) * 4
    budget = _vmem_capacity_bytes() // 4          # for the 2x-buffered x blocks
    tile = (budget // (2 * bytes_per_row)) // _CHUNK * _CHUNK
    tile = max(_CHUNK, min(int(max_tile), tile))
    # Don't allocate far beyond the actual batch ...
    tile = min(tile, _round_up(batch, _CHUNK))
    # ... and keep the grid >= 2 when the batch allows it (v7x: two TensorCores
    # share the "parallel" batch axis; on v5e/v6e this costs nothing).
    if batch > 2 * _CHUNK:
        tile = min(tile, _round_up(-(-batch // 2), _CHUNK))
    return max(tile, _CHUNK)


def _pack_params(params, num_features):
    """Pack the 8 tiny tensors into one weight array and one bias array."""
    f = num_features
    dt = params["w1"].dtype
    wp = jnp.zeros((_ROWS, max(f, _H2)), dt)
    wp = wp.at[_R1:_R1 + _H1, :f].set(params["w1"])
    wp = wp.at[_R2:_R2 + _H2, :_H1].set(params["w2"])
    wp = wp.at[_R3:_R3 + _H3, :_H2].set(params["w3"])
    wp = wp.at[_R4:_R4 + _HO, :_H3].set(params["w4"])
    bp = jnp.zeros((_ROWS, 1), dt)
    bp = bp.at[_R1:_R1 + _H1].set(params["b1"])
    bp = bp.at[_R2:_R2 + _H2].set(params["b2"])
    bp = bp.at[_R3:_R3 + _H3].set(params["b3"])
    bp = bp.at[_R4:_R4 + _HO].set(params["b4"])
    return wp, bp


def multiple_regression_forward(x, params, *, max_batch_tile=16 * 1024):
    """x: [B, F] (f32 or bf16). params: w_i [out, in], b_i [out, 1]. Returns [B, 1] f32."""
    batch, num_features = x.shape
    tile = _pick_batch_tile(batch, num_features, max_batch_tile)
    n_chunks = tile // _CHUNK
    grid = (pl.cdiv(batch, tile),)
    padded_batch = grid[0] * tile     # output allocated tile-aligned; sliced below

    wp, bp = _pack_params(params, num_features)

    # Scoped-VMEM budget: double-buffered x blocks (lane-padded) + double-
    # buffered [1, tile] output blocks + packed params + headroom.  Capped at
    # 64 MiB so the request is valid even on v7x.
    x_block_bytes = tile * _round_up(max(num_features, 1), 128) * 4
    vmem_need = 2 * x_block_bytes + 2 * 8 * tile * 4 + (2 << 20)
    vmem_limit = int(min(64 << 20, max(32 << 20, vmem_need + (8 << 20))))

    vmem_resident = pl.BlockSpec(memory_space=pltpu.MemorySpace.VMEM)

    out = pl.pallas_call(
        _make_kernel(num_features, n_chunks),
        out_shape=jax.ShapeDtypeStruct((1, padded_batch), jnp.float32),
        grid_spec=pltpu.PrefetchScalarGridSpec(
            num_scalar_prefetch=0,
            grid=grid,
            in_specs=[
                pl.BlockSpec((tile, num_features), lambda i: (i, 0)),  # x, natural layout
                vmem_resident,                                         # packed weights
                vmem_resident,                                         # packed biases
            ],
            out_specs=pl.BlockSpec((1, tile), lambda i: (0, i)),
        ),
        compiler_params=pltpu.CompilerParams(
            dimension_semantics=("parallel",),
            vmem_limit_bytes=vmem_limit),
    )(x, wp, bp)                                    # [1, padded_batch]

    # Columns >= batch correspond to the ragged boundary block (undefined
    # values); slice them off, then a (free) relayout to [B, 1].
    return out[:, :batch].T


def init_params(key, num_features):
    """Parameters in PyTorch layout: weights [out, in], biases [out, 1]."""
    dims = [(num_features, _H1), (_H1, _H2), (_H2, _H3), (_H3, _HO)]
    params = {}
    keys = jax.random.split(key, 2 * len(dims))
    for idx, (d_in, d_out) in enumerate(dims):
        bound = 1.0 / jnp.sqrt(jnp.float32(d_in))   # PyTorch-default-ish Linear init
        w = jax.random.uniform(keys[2 * idx], (d_out, d_in),
                               minval=-bound, maxval=bound, dtype=jnp.float32)
        b = jax.random.uniform(keys[2 * idx + 1], (d_out, 1),
                               minval=-bound, maxval=bound, dtype=jnp.float32)
        params[f"w{idx + 1}"] = w
        params[f"b{idx + 1}"] = b
    return params


def reference_forward(x, p):
    h = jnp.maximum(x @ p["w1"].T + p["b1"].T, 0.0)
    h = jnp.maximum(h @ p["w2"].T + p["b2"].T, 0.0)
    h = jnp.maximum(h @ p["w3"].T + p["b3"].T, 0.0)
    return h @ p["w4"].T + p["b4"].T


if __name__ == "__main__":
    key = jax.random.PRNGKey(0)
    k_x, k_p = jax.random.split(key)

    batch, num_features = 16, 8      # small demo shapes (ragged block handled in-kernel)
    x = jax.random.normal(k_x, (batch, num_features), dtype=jnp.float32)
    params = init_params(k_p, num_features)

    out = multiple_regression_forward(x, params)
    out = jax.block_until_ready(out)

    ref = reference_forward(x, params)
    assert out.shape == (batch, 1)
    assert jnp.allclose(out, ref, atol=1e-5, rtol=1e-5), "mismatch vs reference"

    print("KERNEL_OK")
</pallas_src>

<mosaic_0001>
module attributes {stable_mosaic.version = 11 : i64} {
  func.func @kernel(%arg0: i32, %arg1: memref<512x8xf32, #tpu.memory_space<vmem>>, %arg2: memref<65x32xf32, #tpu.memory_space<vmem>>, %arg3: memref<65x1xf32, #tpu.memory_space<vmem>>, %arg4: memref<1x512xf32, #tpu.memory_space<vmem>>) attributes {dimension_semantics = [#tpu.dimension_semantics<parallel>], iteration_bounds = array<i64: 1>, scalar_prefetch = 0 : i64, scratch_operands = 0 : i64, tpu.core_type = #tpu.core_type<tc>, window_params = [{transform_indices = @transform_0, window_bounds = array<i64: 512, 8>}, {pipeline_mode = #tpu.pipeline_mode<synchronous>, transform_indices = @transform_1, window_bounds = array<i64: 65, 32>}, {pipeline_mode = #tpu.pipeline_mode<synchronous>, transform_indices = @transform_2, window_bounds = array<i64: 65, 1>}, {transform_indices = @transform_3, window_bounds = array<i64: 1, 512>}]} {
    %c0 = arith.constant 0 : index
    %c0_0 = arith.constant 0 : index
    %0 = vector.load %arg2[%c0, %c0_0] : memref<65x32xf32, #tpu.memory_space<vmem>>, vector<16x8xf32>
    %c16 = arith.constant 16 : index
    %c0_1 = arith.constant 0 : index
    %1 = vector.load %arg2[%c16, %c0_1] : memref<65x32xf32, #tpu.memory_space<vmem>>, vector<32x16xf32>
    %c48 = arith.constant 48 : index
    %c0_2 = arith.constant 0 : index
    %2 = vector.load %arg2[%c48, %c0_2] : memref<65x32xf32, #tpu.memory_space<vmem>>, vector<16x32xf32>
    %c64 = arith.constant 64 : index
    %c0_3 = arith.constant 0 : index
    %3 = vector.load %arg2[%c64, %c0_3] : memref<65x32xf32, #tpu.memory_space<vmem>>, vector<1x16xf32>
    %c0_4 = arith.constant 0 : index
    %c0_5 = arith.constant 0 : index
    %4 = vector.load %arg3[%c0_4, %c0_5] : memref<65x1xf32, #tpu.memory_space<vmem>>, vector<16x1xf32>
    %c16_6 = arith.constant 16 : index
    %c0_7 = arith.constant 0 : index
    %5 = vector.load %arg3[%c16_6, %c0_7] : memref<65x1xf32, #tpu.memory_space<vmem>>, vector<32x1xf32>
    %c48_8 = arith.constant 48 : index
    %c0_9 = arith.constant 0 : index
    %6 = vector.load %arg3[%c48_8, %c0_9] : memref<65x1xf32, #tpu.memory_space<vmem>>, vector<16x1xf32>
    %c64_10 = arith.constant 64 : index
    %c0_11 = arith.constant 0 : index
    %7 = vector.load %arg3[%c64_10, %c0_11] : memref<65x1xf32, #tpu.memory_space<vmem>>, vector<1x1xf32>
    %c0_12 = arith.constant 0 : index
    %c0_13 = arith.constant 0 : index
    %8 = vector.load %arg1[%c0_12, %c0_13] : memref<512x8xf32, #tpu.memory_space<vmem>>, vector<512x8xf32>
    %cst = arith.constant dense<0.000000e+00> : vector<16x512xf32>
    %9 = tpu.matmul %0, %8, %cst {dimension_numbers = #tpu.dot_dimension_numbers<[1], [1], [0], [0], [0, 0, 1, 0], [], []>} : vector<16x8xf32>, vector<512x8xf32>, vector<16x512xf32> -> vector<16x512xf32>
    %10 = vector.broadcast %4 : vector<16x1xf32> to vector<16x512xf32>
    %11 = arith.addf %9, %10 : vector<16x512xf32>
    %cst_14 = arith.constant 0.000000e+00 : f32
    %12 = vector.broadcast %cst_14 : f32 to vector<16x512xf32>
    %13 = arith.maximumf %11, %12 : vector<16x512xf32>
    %cst_15 = arith.constant dense<0.000000e+00> : vector<32x512xf32>
    %14 = tpu.matmul %1, %13, %cst_15 {dimension_numbers = #tpu.dot_dimension_numbers<[1], [0], [0], [1], [0, 0, 1, 1], [], []>} : vector<32x16xf32>, vector<16x512xf32>, vector<32x512xf32> -> vector<32x512xf32>
    %15 = vector.broadcast %5 : vector<32x1xf32> to vector<32x512xf32>
    %16 = arith.addf %14, %15 : vector<32x512xf32>
    %cst_16 = arith.constant 0.000000e+00 : f32
    %17 = vector.broadcast %cst_16 : f32 to vector<32x512xf32>
    %18 = arith.maximumf %16, %17 : vector<32x512xf32>
    %cst_17 = arith.constant dense<0.000000e+00> : vector<16x512xf32>
    %19 = tpu.matmul %2, %18, %cst_17 {dimension_numbers = #tpu.dot_dimension_numbers<[1], [0], [0], [1], [0, 0, 1, 1], [], []>} : vector<16x32xf32>, vector<32x512xf32>, vector<16x512xf32> -> vector<16x512xf32>
    %20 = vector.broadcast %6 : vector<16x1xf32> to vector<16x512xf32>
    %21 = arith.addf %19, %20 : vector<16x512xf32>
    %cst_18 = arith.constant 0.000000e+00 : f32
    %22 = vector.broadcast %cst_18 : f32 to vector<16x512xf32>
    %23 = arith.maximumf %21, %22 : vector<16x512xf32>
    %cst_19 = arith.constant dense<0.000000e+00> : vector<1x512xf32>
    %24 = tpu.matmul %3, %23, %cst_19 {dimension_numbers = #tpu.dot_dimension_numbers<[1], [0], [0], [1], [0, 0, 1, 1], [], []>} : vector<1x16xf32>, vector<16x512xf32>, vector<1x512xf32> -> vector<1x512xf32>
    %25 = vector.broadcast %7 : vector<1x1xf32> to vector<1x512xf32>
    %26 = arith.addf %24, %25 : vector<1x512xf32>
    %c0_20 = arith.constant 0 : index
    %c0_21 = arith.constant 0 : index
    %27 = vector.load %arg4[%c0_20, %c0_21] : memref<1x512xf32, #tpu.memory_space<vmem>>, vector<1x512xf32>
    tpu.vector_store %arg4[%c0_20, %c0_21], %26 {strides = array<i32>} : memref<1x512xf32, #tpu.memory_space<vmem>>, vector<1x512xf32>,
    return
  }
  func.func @transform_0(%arg0: i32) -> (i32, i32) {
    %c0_i32 = arith.constant 0 : i32
    %c0_i32_0 = arith.constant 0 : i32
    return %arg0, %c0_i32 : i32, i32
  }
  func.func @transform_1(%arg0: i32) -> (i32, i32) {
    %c0_i32 = arith.constant 0 : i32
    %c0_i32_0 = arith.constant 0 : i32
    %c0_i32_1 = arith.constant 0 : i32
    return %c0_i32, %c0_i32_0 : i32, i32
  }
  func.func @transform_2(%arg0: i32) -> (i32, i32) {
    %c0_i32 = arith.constant 0 : i32
    %c0_i32_0 = arith.constant 0 : i32
    %c0_i32_1 = arith.constant 0 : i32
    return %c0_i32, %c0_i32_0 : i32, i32
  }
  func.func @transform_3(%arg0: i32) -> (i32, i32) {
    %c0_i32 = arith.constant 0 : i32
    %c0_i32_0 = arith.constant 0 : i32
    return %c0_i32, %arg0 : i32, i32
  }
}

</mosaic_0001>

<llo_original>
// kernel: tpu_custom_call.1
$region0: #{tpu_custom_call.1}
  #allocation0 [shape = 'u32[]', space=smem, size = 0x4, offset = 0x4, fixed_abs, tag = 'smem constant byte address 0x4 - core index']
  #allocation1 [shape = 'u32[144,128]{1,0:T(1,128)}', space=vmem, size = 0x12000, scoped, tag = 'internal scratch']
  %s0 = inlined_call_operand.vmem [shape: f32[16,8], index: 0, kind: input, shape index: {}]
  %s1 = inlined_call_operand.vmem [shape: f32[65,32], index: 1, kind: input, shape index: {}]
  %s2 = inlined_call_operand.vmem [shape: f32[65,1], index: 2, kind: input, shape index: {}]
  %s3 = inlined_call_operand.hbm [shape: f32[1,512], index: 3, kind: output, shape index: {}]
  %s4 = sld [smem:[#allocation0]]
  $region22: #{tpu_custom_call.1} parent=0
    _
  %s6 = ssub.s32 1, %s4
  %s7 = scalar_select 0, %s6, %s4
  $region1: #{tpu_custom_call.1} parent=0
    #allocation2 [shape = 'u8[2048]{0}', space=vmem, size = 0x800, scoped, tag = 'output window, operand 0, single buffered']
    #allocation3 [shape = 's32[1]{0}', space=sflag, size = 0x4, scoped, tag = 'scoped memory for tpu_custom_call.1']
    %8 = vsyncpa [#allocation3], 0
    // Predicated region
    $region2: #{tpu_custom_call.1} parent=1 // pred_check
      _
    $region3: #{tpu_custom_call.1} parent=1 // pred_check_branch
      %10 = sbr.rel (0) target = $region5
    $region4: #{tpu_custom_call.1} parent=1 // pred_region
      _
    $region5: #{tpu_custom_call.1} parent=1 // pred_fallthru
      _
    // Predicated region
    $region6: #{tpu_custom_call.1} parent=1 // pred_check
      _
    $region7: #{tpu_custom_call.1} parent=1 // pred_check_branch
      %12 = sbr.rel (0) target = $region9
    $region8: #{tpu_custom_call.1} parent=1 // pred_region
      _
    $region9: #{tpu_custom_call.1} parent=1 // pred_fallthru
      _
    // Predicated region
    $region10: #{tpu_custom_call.1} parent=1 // pred_check
      _
    $region11: #{tpu_custom_call.1} parent=1 // pred_check_branch
      %14 = sbr.rel (0) target = $region13
    $region12: #{tpu_custom_call.1} parent=1 // pred_region
      _
    $region13: #{tpu_custom_call.1} parent=1 // pred_fallthru
      _
    %v15 = vld [vmem:[%s1] sm:$0xff]
    %v16 = vld [vmem:[%s1 + $0x8] sm:$0xff]
    %v17 = vld [vmem:[%s1 + $0x10] sm:$0xff]
    %v18 = vld [vmem:[%s1 + $0x18] sm:$0xff]
    %v19 = vld [vmem:[%s1 + $0x20] sm:$0xff]
    %v20 = vld [vmem:[%s1 + $0x28] sm:$0xff]
    %v21 = vld [vmem:[%s1 + $0x30] sm:$0xff]
    %v22 = vld [vmem:[%s1 + $0x38] sm:$0xff]
    %v23 = vld [vmem:[%s1 + $0x40] sm:$0x1]
    %v24 = vld [vmem:[%s2] sm:$0xff]
    %v25 = vld [vmem:[%s2 + $0x8] sm:$0xff]
    %v26 = vld [vmem:[%s2 + $0x10] sm:$0xff]
    %v27 = vld [vmem:[%s2 + $0x18] sm:$0xff]
    %v28 = vld [vmem:[%s2 + $0x20] sm:$0xff]
    %v29 = vld [vmem:[%s2 + $0x28] sm:$0xff]
    %v30 = vld [vmem:[%s2 + $0x30] sm:$0xff]
    %v31 = vld [vmem:[%s2 + $0x38] sm:$0xff]
    %v32 = vld [vmem:[%s2 + $0x40] sm:$0x1]
    %v33 = vld [vmem:[%s0] sm:$0xff]
    %v34 = vld [vmem:[%s0 + $0x8] sm:$0xff]
    %v35 = vld [vmem:[%s0 + $0x10] sm:$0xff]
    %v36 = vld [vmem:[%s0 + $0x18] sm:$0xff]
    %v37 = vld [vmem:[%s0 + $0x20] sm:$0xff]
    %v38 = vld [vmem:[%s0 + $0x28] sm:$0xff]
    %v39 = vld [vmem:[%s0 + $0x30] sm:$0xff]
    %v40 = vld [vmem:[%s0 + $0x38] sm:$0xff]
    %v41 = vld [vmem:[%s0 + $0x40] sm:$0xff]
    %v42 = vld [vmem:[%s0 + $0x48] sm:$0xff]
    %v43 = vld [vmem:[%s0 + $0x50] sm:$0xff]
    %v44 = vld [vmem:[%s0 + $0x58] sm:$0xff]
    %v45 = vld [vmem:[%s0 + $0x60] sm:$0xff]
    %v46 = vld [vmem:[%s0 + $0x68] sm:$0xff]
    %v47 = vld [vmem:[%s0 + $0x70] sm:$0xff]
    %v48 = vld [vmem:[%s0 + $0x78] sm:$0xff]
    %v49 = vld [vmem:[%s0 + $0x80] sm:$0xff]
    %v50 = vld [vmem:[%s0 + $0x88] sm:$0xff]
    %v51 = vld [vmem:[%s0 + $0x90] sm:$0xff]
    %v52 = vld [vmem:[%s0 + $0x98] sm:$0xff]
    %v53 = vld [vmem:[%s0 + $0xa0] sm:$0xff]
    %v54 = vld [vmem:[%s0 + $0xa8] sm:$0xff]
    %v55 = vld [vmem:[%s0 + $0xb0] sm:$0xff]
    %v56 = vld [vmem:[%s0 + $0xb8] sm:$0xff]
    %v57 = vld [vmem:[%s0 + $0xc0] sm:$0xff]
    %v58 = vld [vmem:[%s0 + $0xc8] sm:$0xff]
    %v59 = vld [vmem:[%s0 + $0xd0] sm:$0xff]
    %v60 = vld [vmem:[%s0 + $0xd8] sm:$0xff]
    %v61 = vld [vmem:[%s0 + $0xe0] sm:$0xff]
    %v62 = vld [vmem:[%s0 + $0xe8] sm:$0xff]
    %v63 = vld [vmem:[%s0 + $0xf0] sm:$0xff]
    %v64 = vld [vmem:[%s0 + $0xf8] sm:$0xff]
    %v65 = vld [vmem:[%s0 + $0x100] sm:$0xff]
    %v66 = vld [vmem:[%s0 + $0x108] sm:$0xff]
    %v67 = vld [vmem:[%s0 + $0x110] sm:$0xff]
    %v68 = vld [vmem:[%s0 + $0x118] sm:$0xff]
    %v69 = vld [vmem:[%s0 + $0x120] sm:$0xff]
    %v70 = vld [vmem:[%s0 + $0x128] sm:$0xff]
    %v71 = vld [vmem:[%s0 + $0x130] sm:$0xff]
    %v72 = vld [vmem:[%s0 + $0x138] sm:$0xff]
    %v73 = vld [vmem:[%s0 + $0x140] sm:$0xff]
    %v74 = vld [vmem:[%s0 + $0x148] sm:$0xff]
    %v75 = vld [vmem:[%s0 + $0x150] sm:$0xff]
    %v76 = vld [vmem:[%s0 + $0x158] sm:$0xff]
    %v77 = vld [vmem:[%s0 + $0x160] sm:$0xff]
    %v78 = vld [vmem:[%s0 + $0x168] sm:$0xff]
    %v79 = vld [vmem:[%s0 + $0x170] sm:$0xff]
    %v80 = vld [vmem:[%s0 + $0x178] sm:$0xff]
    %v81 = vld [vmem:[%s0 + $0x180] sm:$0xff]
    %v82 = vld [vmem:[%s0 + $0x188] sm:$0xff]
    %v83 = vld [vmem:[%s0 + $0x190] sm:$0xff]
    %v84 = vld [vmem:[%s0 + $0x198] sm:$0xff]
    %v85 = vld [vmem:[%s0 + $0x1a0] sm:$0xff]
    %v86 = vld [vmem:[%s0 + $0x1a8] sm:$0xff]
    %v87 = vld [vmem:[%s0 + $0x1b0] sm:$0xff]
    %v88 = vld [vmem:[%s0 + $0x1b8] sm:$0xff]
    %v89 = vld [vmem:[%s0 + $0x1c0] sm:$0xff]
    %v90 = vld [vmem:[%s0 + $0x1c8] sm:$0xff]
    %v91 = vld [vmem:[%s0 + $0x1d0] sm:$0xff]
    %v92 = vld [vmem:[%s0 + $0x1d8] sm:$0xff]
    %v93 = vld [vmem:[%s0 + $0x1e0] sm:$0xff]
    %v94 = vld [vmem:[%s0 + $0x1e8] sm:$0xff]
    %v95 = vld [vmem:[%s0 + $0x1f0] sm:$0xff]
    %v96 = vld [vmem:[%s0 + $0x1f8] sm:$0xff]
    %98 = vset.pattern.permute.xlu0 0
    %99 = vperm.xlu0 %98, %v24
    %v100 = vpop.permute.xlu0 %99
    %103 = vset.pattern.permute.xlu0 0
    %104 = vperm.xlu0 %103, %v25
    %v105 = vpop.permute.xlu0 %104
    %vm107 = vcmask 64512
    %v109 = vsel %vm107, %v15, 0
    %v112 = vsel %vm107, %v16, 0
    %v115 = vsel %vm107, %v33, 0
    %v118 = vsel %vm107, %v34, 0
    %v121 = vsel %vm107, %v35, 0
    %v124 = vsel %vm107, %v36, 0
    %v127 = vsel %vm107, %v37, 0
    %v130 = vsel %vm107, %v38, 0
    %v133 = vsel %vm107, %v39, 0
    %v136 = vsel %vm107, %v40, 0
    %v139 = vsel %vm107, %v41, 0
    %v142 = vsel %vm107, %v42, 0
    %v145 = vsel %vm107, %v43, 0
    %v148 = vsel %vm107, %v44, 0
    %v151 = vsel %vm107, %v45, 0
    %v154 = vsel %vm107, %v46, 0
    %v157 = vsel %vm107, %v47, 0
    %v160 = vsel %vm107, %v48, 0
    %v163 = vsel %vm107, %v49, 0
    %v166 = vsel %vm107, %v50, 0
    %v169 = vsel %vm107, %v51, 0
    %v172 = vsel %vm107, %v52, 0
    %v175 = vsel %vm107, %v53, 0
    %v178 = vsel %vm107, %v54, 0
    %v181 = vsel %vm107, %v55, 0
    %v184 = vsel %vm107, %v56, 0
    %v187 = vsel %vm107, %v57, 0
    %v190 = vsel %vm107, %v58, 0
    %v193 = vsel %vm107, %v59, 0
    %v196 = vsel %vm107, %v60, 0
    %v199 = vsel %vm107, %v61, 0
    %v202 = vsel %vm107, %v62, 0
    %v205 = vsel %vm107, %v63, 0
    %v208 = vsel %vm107, %v64, 0
    %v211 = vsel %vm107, %v65, 0
    %v214 = vsel %vm107, %v66, 0
    %v217 = vsel %vm107, %v67, 0
    %v220 = vsel %vm107, %v68, 0
    %v223 = vsel %vm107, %v69, 0
    %v226 = vsel %vm107, %v70, 0
    %v229 = vsel %vm107, %v71, 0
    %v232 = vsel %vm107, %v72, 0
    %v235 = vsel %vm107, %v73, 0
    %v238 = vsel %vm107, %v74, 0
    %v241 = vsel %vm107, %v75, 0
    %v244 = vsel %vm107, %v76, 0
    %v247 = vsel %vm107, %v77, 0
    %v250 = vsel %vm107, %v78, 0
    %v253 = vsel %vm107, %v79, 0
    %v256 = vsel %vm107, %v80, 0
    %v259 = vsel %vm107, %v81, 0
    %v262 = vsel %vm107, %v82, 0
    %v265 = vsel %vm107, %v83, 0
    %v268 = vsel %vm107, %v84, 0
    %v271 = vsel %vm107, %v85, 0
    %v274 = vsel %vm107, %v86, 0
    %v277 = vsel %vm107, %v87, 0
    %v280 = vsel %vm107, %v88, 0
    %v283 = vsel %vm107, %v89, 0
    %v286 = vsel %vm107, %v90, 0
    %v289 = vsel %vm107, %v91, 0
    %v292 = vsel %vm107, %v92, 0
    %v295 = vsel %vm107, %v93, 0
    %v298 = vsel %vm107, %v94, 0
    %v301 = vsel %vm107, %v95, 0
    %v304 = vsel %vm107, %v96, 0
    %306 = vmatprep.subr.mxu0 0.0
    %307 = vmatpush1.xpose.msra.mxu0 %v115
    %308 = vmatprep.subr.mxu0 0.0
    %309 = vmatpush1.xpose.msra.mxu0 %v118
    %310 = vmatprep.subr.mxu0 0.0
    %311 = vmatpush1.xpose.msra.mxu0 %v121
    %312 = vmatprep.subr.mxu0 0.0
    %313 = vmatpush1.xpose.msra.mxu0 %v124
    %314 = vmatprep.subr.mxu0 0.0
    %315 = vmatpush1.xpose.msra.mxu0 %v127
    %316 = vmatprep.subr.mxu0 0.0
    %317 = vmatpush1.xpose.msra.mxu0 %v130
    %318 = vmatprep.subr.mxu0 0.0
    %319 = vmatpush1.xpose.msra.mxu0 %v133
    %320 = vmatprep.subr.mxu0 0.0
    %321 = vmatpush1.xpose.msra.mxu0 %v136
    %322 = vmatprep.subr.mxu0 0.0
    %323 = vmatpush1.xpose.msra.mxu0 %v139
    %324 = vmatprep.subr.mxu0 0.0
    %325 = vmatpush1.xpose.msra.mxu0 %v142
    %326 = vmatprep.subr.mxu0 0.0
    %327 = vmatpush1.xpose.msra.mxu0 %v145
    %328 = vmatprep.subr.mxu0 0.0
    %329 = vmatpush1.xpose.msra.mxu0 %v148
    %330 = vmatprep.subr.mxu0 0.0
    %331 = vmatpush1.xpose.msra.mxu0 %v151
    %332 = vmatprep.subr.mxu0 0.0
    %333 = vmatpush1.xpose.msra.mxu0 %v154
    %334 = vmatprep.subr.mxu0 0.0
    %335 = vmatpush1.xpose.msra.mxu0 %v157
    %336 = vmatprep.subr.mxu0 0.0
    %337 = vmatpush1.xpose.msra.mxu0 %v160
    %338 = vmatprep.subr.mxu0 0.0
    %339 = vmatpush1.xpose.msra.mxu0 %v163
    %340 = vmatprep.subr.mxu0 0.0
    %341 = vmatpush1.xpose.msra.mxu0 %v166
    %342 = vmatprep.subr.mxu0 0.0
    %343 = vmatpush1.xpose.msra.mxu0 %v169
    %344 = vmatprep.subr.mxu0 0.0
    %345 = vmatpush1.xpose.msra.mxu0 %v172
    %346 = vmatprep.subr.mxu0 0.0
    %347 = vmatpush1.xpose.msra.mxu0 %v175
    %348 = vmatprep.subr.mxu0 0.0
    %349 = vmatpush1.xpose.msra.mxu0 %v178
    %350 = vmatprep.subr.mxu0 0.0
    %351 = vmatpush1.xpose.msra.mxu0 %v181
    %352 = vmatprep.subr.mxu0 0.0
    %353 = vmatpush1.xpose.msra.mxu0 %v184
    %354 = vmatprep.subr.mxu0 0.0
    %355 = vmatpush1.xpose.msra.mxu0 %v187
    %356 = vmatprep.subr.mxu0 0.0
    %357 = vmatpush1.xpose.msra.mxu0 %v190
    %358 = vmatprep.subr.mxu0 0.0
    %359 = vmatpush1.xpose.msra.mxu0 %v193
    %360 = vmatprep.subr.mxu0 0.0
    %361 = vmatpush1.xpose.msra.mxu0 %v196
    %362 = vmatprep.subr.mxu0 0.0
    %363 = vmatpush1.xpose.msra.mxu0 %v199
    %364 = vmatprep.subr.mxu0 0.0
    %365 = vmatpush1.xpose.msra.mxu0 %v202
    %366 = vmatprep.subr.mxu0 0.0
    %367 = vmatpush1.xpose.msra.mxu0 %v205
    %368 = vmatprep.subr.mxu0 0.0
    %369 = vmatpush1.xpose.msra.mxu0 %v208
    %370 = vmatprep.mubr.f32.mxu0 0.0
    %371 = vmatmul.mubr.f32.gmra.mrb[0].mxu0 %v109
    %v372 = vpop.f32.mrb[0].mxu0
    %v373 = vadd.f32 %v100, %v372
    %v374 = vpop.f32.mrb[0].mxu0
    %v375 = vadd.f32 %v100, %v374
    %376 = vmatprep.mubr.f32.mxu0 0.0
    %377 = vmatmul.mubr.f32.gmra.mrb[0].mxu0 %v112
    %v378 = vpop.f32.mrb[0].mxu0
    %v379 = vadd.f32 %v105, %v378
    %v380 = vpop.f32.mrb[0].mxu0
    %v381 = vadd.f32 %v105, %v380
    %382 = vdwg.mxu0
    %383 = vmatprep.subr.mxu0 0.0
    %384 = vmatpush1.xpose.msra.mxu0 %v211
    %385 = vmatprep.subr.mxu0 0.0
    %386 = vmatpush1.xpose.msra.mxu0 %v214
    %387 = vmatprep.subr.mxu0 0.0
    %388 = vmatpush1.xpose.msra.mxu0 %v217
    %389 = vmatprep.subr.mxu0 0.0
    %390 = vmatpush1.xpose.msra.mxu0 %v220
    %391 = vmatprep.subr.mxu0 0.0
    %392 = vmatpush1.xpose.msra.mxu0 %v223
    %393 = vmatprep.subr.mxu0 0.0
    %394 = vmatpush1.xpose.msra.mxu0 %v226
    %395 = vmatprep.subr.mxu0 0.0
    %396 = vmatpush1.xpose.msra.mxu0 %v229
    %397 = vmatprep.subr.mxu0 0.0
    %398 = vmatpush1.xpose.msra.mxu0 %v232
    %399 = vmatprep.subr.mxu0 0.0
    %400 = vmatpush1.xpose.msra.mxu0 %v235
    %401 = vmatprep.subr.mxu0 0.0
    %402 = vmatpush1.xpose.msra.mxu0 %v238
    %403 = vmatprep.subr.mxu0 0.0
    %404 = vmatpush1.xpose.msra.mxu0 %v241
    %405 = vmatprep.subr.mxu0 0.0
    %406 = vmatpush1.xpose.msra.mxu0 %v244
    %407 = vmatprep.subr.mxu0 0.0
    %408 = vmatpush1.xpose.msra.mxu0 %v247
    %409 = vmatprep.subr.mxu0 0.0
    %410 = vmatpush1.xpose.msra.mxu0 %v250
    %411 = vmatprep.subr.mxu0 0.0
    %412 = vmatpush1.xpose.msra.mxu0 %v253
    %413 = vmatprep.subr.mxu0 0.0
    %414 = vmatpush1.xpose.msra.mxu0 %v256
    %415 = vmatprep.subr.mxu0 0.0
    %416 = vmatpush1.xpose.msra.mxu0 %v259
    %417 = vmatprep.subr.mxu0 0.0
    %418 = vmatpush1.xpose.msra.mxu0 %v262
    %419 = vmatprep.subr.mxu0 0.0
    %420 = vmatpush1.xpose.msra.mxu0 %v265
    %421 = vmatprep.subr.mxu0 0.0
    %422 = vmatpush1.xpose.msra.mxu0 %v268
    %423 = vmatprep.subr.mxu0 0.0
    %424 = vmatpush1.xpose.msra.mxu0 %v271
    %425 = vmatprep.subr.mxu0 0.0
    %426 = vmatpush1.xpose.msra.mxu0 %v274
    %427 = vmatprep.subr.mxu0 0.0
    %428 = vmatpush1.xpose.msra.mxu0 %v277
    %429 = vmatprep.subr.mxu0 0.0
    %430 = vmatpush1.xpose.msra.mxu0 %v280
    %431 = vmatprep.subr.mxu0 0.0
    %432 = vmatpush1.xpose.msra.mxu0 %v283
    %433 = vmatprep.subr.mxu0 0.0
    %434 = vmatpush1.xpose.msra.mxu0 %v286
    %435 = vmatprep.subr.mxu0 0.0
    %436 = vmatpush1.xpose.msra.mxu0 %v289
    %437 = vmatprep.subr.mxu0 0.0
    %438 = vmatpush1.xpose.msra.mxu0 %v292
    %439 = vmatprep.subr.mxu0 0.0
    %440 = vmatpush1.xpose.msra.mxu0 %v295
    %441 = vmatprep.subr.mxu0 0.0
    %442 = vmatpush1.xpose.msra.mxu0 %v298
    %443 = vmatprep.subr.mxu0 0.0
    %444 = vmatpush1.xpose.msra.mxu0 %v301
    %445 = vmatprep.subr.mxu0 0.0
    %446 = vmatpush1.xpose.msra.mxu0 %v304
    %447 = vmatprep.mubr.f32.mxu0 0.0
    %448 = vmatmul.mubr.f32.gmra.mrb[0].mxu0 %v109
    %v449 = vpop.f32.mrb[0].mxu0
    %v450 = vadd.f32 %v100, %v449
    %v451 = vpop.f32.mrb[0].mxu0
    %v452 = vadd.f32 %v100, %v451
    %453 = vmatprep.mubr.f32.mxu0 0.0
    %454 = vmatmul.mubr.f32.gmra.mrb[0].mxu0 %v112
    %v455 = vpop.f32.mrb[0].mxu0
    %v456 = vadd.f32 %v105, %v455
    %v457 = vpop.f32.mrb[0].mxu0
    %v458 = vadd.f32 %v105, %v457
    %459 = vdwg.mxu0
    %v460 = vmax.f32 %v373, 0.0
    %v461 = vmax.f32 %v375, 0.0
    %v462 = vmax.f32 %v450, 0.0
    %v463 = vmax.f32 %v452, 0.0
    %v464 = vmax.f32 %v379, 0.0
    %v465 = vmax.f32 %v381, 0.0
    %v466 = vmax.f32 %v456, 0.0
    %v467 = vmax.f32 %v458, 0.0
    %469 = vset.pattern.permute.xlu0 0
    %470 = vperm.xlu0 %469, %v26
    %v471 = vpop.permute.xlu0 %470
    %474 = vset.pattern.permute.xlu0 0
    %475 = vperm.xlu0 %474, %v27
    %v476 = vpop.permute.xlu0 %475
    %479 = vset.pattern.permute.xlu0 0
    %480 = vperm.xlu0 %479, %v28
    %v481 = vpop.permute.xlu0 %480
    %484 = vset.pattern.permute.xlu0 0
    %485 = vperm.xlu0 %484, %v29
    %v486 = vpop.permute.xlu0 %485
    %vm488 = vcmask 130048
    %v490 = vsel %vm488, %v17, 0
    %v493 = vsel %vm488, %v18, 0
    %v496 = vsel %vm488, %v19, 0
    %v499 = vsel %vm488, %v20, 0
    %501 = vmatprep.subr.mxu0 %v461
    %502 = vmatpush1.msra.mxu0 %v460
    %503 = vmatprep.subr.mxu0 %v465
    %504 = vmatpush1.msra.mxu0 %v464
    %505 = vmatprep.subr.mxu0 0.0
    %506 = vmatpush1.msra.mxu0 0.0
    %507 = vmatprep.subr.mxu0 0.0
    %508 = vmatpush1.msra.mxu0 0.0
    %509 = vmatprep.subr.mxu0 0.0
    %510 = vmatpush1.msra.mxu0 0.0
    %511 = vmatprep.subr.mxu0 0.0
    %512 = vmatpush1.msra.mxu0 0.0
    %513 = vmatprep.subr.mxu0 0.0
    %514 = vmatpush1.msra.mxu0 0.0
    %515 = vmatprep.subr.mxu0 0.0
    %516 = vmatpush1.msra.mxu0 0.0
    %517 = vmatprep.subr.mxu0 0.0
    %518 = vmatpush1.msra.mxu0 0.0
    %519 = vmatprep.subr.mxu0 0.0
    %520 = vmatpush1.msra.mxu0 0.0
    %521 = vmatprep.subr.mxu0 0.0
    %522 = vmatpush1.msra.mxu0 0.0
    %523 = vmatprep.subr.mxu0 0.0
    %524 = vmatpush1.msra.mxu0 0.0
    %525 = vmatprep.subr.mxu0 0.0
    %526 = vmatpush1.msra.mxu0 0.0
    %527 = vmatprep.subr.mxu0 0.0
    %528 = vmatpush1.msra.mxu0 0.0
    %529 = vmatprep.subr.mxu0 0.0
    %530 = vmatpush1.msra.mxu0 0.0
    %531 = vmatprep.subr.mxu0 0.0
    %532 = vmatpush1.msra.mxu0 0.0
    %533 = vmatprep.subr.mxu0 0.0
    %534 = vmatpush1.msra.mxu0 0.0
    %535 = vmatprep.subr.mxu0 0.0
    %536 = vmatpush1.msra.mxu0 0.0
    %537 = vmatprep.subr.mxu0 0.0
    %538 = vmatpush1.msra.mxu0 0.0
    %539 = vmatprep.subr.mxu0 0.0
    %540 = vmatpush1.msra.mxu0 0.0
    %541 = vmatprep.subr.mxu0 0.0
    %542 = vmatpush1.msra.mxu0 0.0
    %543 = vmatprep.subr.mxu0 0.0
    %544 = vmatpush1.msra.mxu0 0.0
    %545 = vmatprep.subr.mxu0 0.0
    %546 = vmatpush1.msra.mxu0 0.0
    %547 = vmatprep.subr.mxu0 0.0
    %548 = vmatpush1.msra.mxu0 0.0
    %549 = vmatprep.subr.mxu0 0.0
    %550 = vmatpush1.msra.mxu0 0.0
    %551 = vmatprep.subr.mxu0 0.0
    %552 = vmatpush1.msra.mxu0 0.0
    %553 = vmatprep.subr.mxu0 0.0
    %554 = vmatpush1.msra.mxu0 0.0
    %555 = vmatprep.subr.mxu0 0.0
    %556 = vmatpush1.msra.mxu0 0.0
    %557 = vmatprep.subr.mxu0 0.0
    %558 = vmatpush1.msra.mxu0 0.0
    %559 = vmatprep.subr.mxu0 0.0
    %560 = vmatpush1.msra.mxu0 0.0
    %561 = vmatprep.subr.mxu0 0.0
    %562 = vmatpush1.msra.mxu0 0.0
    %563 = vmatprep.subr.mxu0 0.0
    %564 = vmatpush1.msra.mxu0 0.0
    %565 = vmatprep.mubr.f32.mxu0 0.0
    %566 = vmatmul.mubr.f32.gmra.mrb[0].mxu0 %v490
    %v567 = vpop.f32.mrb[0].mxu0
    %v568 = vadd.f32 %v471, %v567
    %v569 = vpop.f32.mrb[0].mxu0
    %v570 = vadd.f32 %v471, %v569
    %571 = vmatprep.mubr.f32.mxu0 0.0
    %572 = vmatmul.mubr.f32.gmra.mrb[0].mxu0 %v493
    %v573 = vpop.f32.mrb[0].mxu0
    %v574 = vadd.f32 %v476, %v573
    %v575 = vpop.f32.mrb[0].mxu0
    %v576 = vadd.f32 %v476, %v575
    %577 = vmatprep.mubr.f32.mxu0 0.0
    %578 = vmatmul.mubr.f32.gmra.mrb[0].mxu0 %v496
    %v579 = vpop.f32.mrb[0].mxu0
    %v580 = vadd.f32 %v481, %v579
    %v581 = vpop.f32.mrb[0].mxu0
    %v582 = vadd.f32 %v481, %v581
    %583 = vmatprep.mubr.f32.mxu0 0.0
    %584 = vmatmul.mubr.f32.gmra.mrb[0].mxu0 %v499
    %v585 = vpop.f32.mrb[0].mxu0
    %v586 = vadd.f32 %v486, %v585
    %v587 = vpop.f32.mrb[0].mxu0
    %v588 = vadd.f32 %v486, %v587
    %589 = vdwg.mxu0
    %590 = vmatprep.subr.mxu0 %v463
    %591 = vmatpush1.msra.mxu0 %v462
    %592 = vmatprep.subr.mxu0 %v467
    %593 = vmatpush1.msra.mxu0 %v466
    %594 = vmatprep.subr.mxu0 0.0
    %595 = vmatpush1.msra.mxu0 0.0
    %596 = vmatprep.subr.mxu0 0.0
    %597 = vmatpush1.msra.mxu0 0.0
    %598 = vmatprep.subr.mxu0 0.0
    %599 = vmatpush1.msra.mxu0 0.0
    %600 = vmatprep.subr.mxu0 0.0
    %601 = vmatpush1.msra.mxu0 0.0
    %602 = vmatprep.subr.mxu0 0.0
    %603 = vmatpush1.msra.mxu0 0.0
    %604 = vmatprep.subr.mxu0 0.0
    %605 = vmatpush1.msra.mxu0 0.0
    %606 = vmatprep.subr.mxu0 0.0
    %607 = vmatpush1.msra.mxu0 0.0
    %608 = vmatprep.subr.mxu0 0.0
    %609 = vmatpush1.msra.mxu0 0.0
    %610 = vmatprep.subr.mxu0 0.0
    %611 = vmatpush1.msra.mxu0 0.0
    %612 = vmatprep.subr.mxu0 0.0
    %613 = vmatpush1.msra.mxu0 0.0
    %614 = vmatprep.subr.mxu0 0.0
    %615 = vmatpush1.msra.mxu0 0.0
    %616 = vmatprep.subr.mxu0 0.0
    %617 = vmatpush1.msra.mxu0 0.0
    %618 = vmatprep.subr.mxu0 0.0
    %619 = vmatpush1.msra.mxu0 0.0
    %620 = vmatprep.subr.mxu0 0.0
    %621 = vmatpush1.msra.mxu0 0.0
    %622 = vmatprep.subr.mxu0 0.0
    %623 = vmatpush1.msra.mxu0 0.0
    %624 = vmatprep.subr.mxu0 0.0
    %625 = vmatpush1.msra.mxu0 0.0
    %626 = vmatprep.subr.mxu0 0.0
    %627 = vmatpush1.msra.mxu0 0.0
    %628 = vmatprep.subr.mxu0 0.0
    %629 = vmatpush1.msra.mxu0 0.0
    %630 = vmatprep.subr.mxu0 0.0
    %631 = vmatpush1.msra.mxu0 0.0
    %632 = vmatprep.subr.mxu0 0.0
    %633 = vmatpush1.msra.mxu0 0.0
    %634 = vmatprep.subr.mxu0 0.0
    %635 = vmatpush1.msra.mxu0 0.0
    %636 = vmatprep.subr.mxu0 0.0
    %637 = vmatpush1.msra.mxu0 0.0
    %638 = vmatprep.subr.mxu0 0.0
    %639 = vmatpush1.msra.mxu0 0.0
    %640 = vmatprep.subr.mxu0 0.0
    %641 = vmatpush1.msra.mxu0 0.0
    %642 = vmatprep.subr.mxu0 0.0
    %643 = vmatpush1.msra.mxu0 0.0
    %644 = vmatprep.subr.mxu0 0.0
    %645 = vmatpush1.msra.mxu0 0.0
    %646 = vmatprep.subr.mxu0 0.0
    %647 = vmatpush1.msra.mxu0 0.0
    %648 = vmatprep.subr.mxu0 0.0
    %649 = vmatpush1.msra.mxu0 0.0
    %650 = vmatprep.subr.mxu0 0.0
    %651 = vmatpush1.msra.mxu0 0.0
    %652 = vmatprep.subr.mxu0 0.0
    %653 = vmatpush1.msra.mxu0 0.0
    %654 = vmatprep.mubr.f32.mxu0 0.0
    %655 = vmatmul.mubr.f32.gmra.mrb[0].mxu0 %v490
    %v656 = vpop.f32.mrb[0].mxu0
    %v657 = vadd.f32 %v471, %v656
    %v658 = vpop.f32.mrb[0].mxu0
    %v659 = vadd.f32 %v471, %v658
    %660 = vmatprep.mubr.f32.mxu0 0.0
    %661 = vmatmul.mubr.f32.gmra.mrb[0].mxu0 %v493
    %v662 = vpop.f32.mrb[0].mxu0
    %v663 = vadd.f32 %v476, %v662
    %v664 = vpop.f32.mrb[0].mxu0
    %v665 = vadd.f32 %v476, %v664
    %666 = vmatprep.mubr.f32.mxu0 0.0
    %667 = vmatmul.mubr.f32.gmra.mrb[0].mxu0 %v496
    %v668 = vpop.f32.mrb[0].mxu0
    %v669 = vadd.f32 %v481, %v668
    %v670 = vpop.f32.mrb[0].mxu0
    %v671 = vadd.f32 %v481, %v670
    %672 = vmatprep.mubr.f32.mxu0 0.0
    %673 = vmatmul.mubr.f32.gmra.mrb[0].mxu0 %v499
    %v674 = vpop.f32.mrb[0].mxu0
    %v675 = vadd.f32 %v486, %v674
    %v676 = vpop.f32.mrb[0].mxu0
    %v677 = vadd.f32 %v486, %v676
    %678 = vdwg.mxu0
    %v679 = vmax.f32 %v568, 0.0
    %v680 = vmax.f32 %v570, 0.0
    %v681 = vmax.f32 %v657, 0.0
    %v682 = vmax.f32 %v659, 0.0
    %v683 = vmax.f32 %v574, 0.0
    %v684 = vmax.f32 %v576, 0.0
    %v685 = vmax.f32 %v663, 0.0
    %v686 = vmax.f32 %v665, 0.0
    %v687 = vmax.f32 %v580, 0.0
    %v688 = vmax.f32 %v582, 0.0
    %v689 = vmax.f32 %v669, 0.0
    %v690 = vmax.f32 %v671, 0.0
    %v691 = vmax.f32 %v586, 0.0
    %v692 = vmax.f32 %v588, 0.0
    %v693 = vmax.f32 %v675, 0.0
    %v694 = vmax.f32 %v677, 0.0
    %696 = vset.pattern.permute.xlu0 0
    %697 = vperm.xlu0 %696, %v30
    %v698 = vpop.permute.xlu0 %697
    %701 = vset.pattern.permute.xlu0 0
    %702 = vperm.xlu0 %701, %v31
    %v703 = vpop.permute.xlu0 %702
    %vm705 = vcmask 261120
    %v707 = vsel %vm705, %v21, 0
    %v710 = vsel %vm705, %v22, 0
    %712 = vmatprep.subr.mxu0 %v680
    %713 = vmatpush1.msra.mxu0 %v679
    %714 = vmatprep.subr.mxu0 %v684
    %715 = vmatpush1.msra.mxu0 %v683
    %716 = vmatprep.subr.mxu0 %v688
    %717 = vmatpush1.msra.mxu0 %v687
    %718 = vmatprep.subr.mxu0 %v692
    %719 = vmatpush1.msra.mxu0 %v691
    %720 = vmatprep.subr.mxu0 0.0
    %721 = vmatpush1.msra.mxu0 0.0
    %722 = vmatprep.subr.mxu0 0.0
    %723 = vmatpush1.msra.mxu0 0.0
    %724 = vmatprep.subr.mxu0 0.0
    %725 = vmatpush1.msra.mxu0 0.0
    %726 = vmatprep.subr.mxu0 0.0
    %727 = vmatpush1.msra.mxu0 0.0
    %728 = vmatprep.subr.mxu0 0.0
    %729 = vmatpush1.msra.mxu0 0.0
    %730 = vmatprep.subr.mxu0 0.0
    %731 = vmatpush1.msra.mxu0 0.0
    %732 = vmatprep.subr.mxu0 0.0
    %733 = vmatpush1.msra.mxu0 0.0
    %734 = vmatprep.subr.mxu0 0.0
    %735 = vmatpush1.msra.mxu0 0.0
    %736 = vmatprep.subr.mxu0 0.0
    %737 = vmatpush1.msra.mxu0 0.0
    %738 = vmatprep.subr.mxu0 0.0
    %739 = vmatpush1.msra.mxu0 0.0
    %740 = vmatprep.subr.mxu0 0.0
    %741 = vmatpush1.msra.mxu0 0.0
    %742 = vmatprep.subr.mxu0 0.0
    %743 = vmatpush1.msra.mxu0 0.0
    %744 = vmatprep.subr.mxu0 0.0
    %745 = vmatpush1.msra.mxu0 0.0
    %746 = vmatprep.subr.mxu0 0.0
    %747 = vmatpush1.msra.mxu0 0.0
    %748 = vmatprep.subr.mxu0 0.0
    %749 = vmatpush1.msra.mxu0 0.0
    %750 = vmatprep.subr.mxu0 0.0
    %751 = vmatpush1.msra.mxu0 0.0
    %752 = vmatprep.subr.mxu0 0.0
    %753 = vmatpush1.msra.mxu0 0.0
    %754 = vmatprep.subr.mxu0 0.0
    %755 = vmatpush1.msra.mxu0 0.0
    %756 = vmatprep.subr.mxu0 0.0
    %757 = vmatpush1.msra.mxu0 0.0
    %758 = vmatprep.subr.mxu0 0.0
    %759 = vmatpush1.msra.mxu0 0.0
    %760 = vmatprep.subr.mxu0 0.0
    %761 = vmatpush1.msra.mxu0 0.0
    %762 = vmatprep.subr.mxu0 0.0
    %763 = vmatpush1.msra.mxu0 0.0
    %764 = vmatprep.subr.mxu0 0.0
    %765 = vmatpush1.msra.mxu0 0.0
    %766 = vmatprep.subr.mxu0 0.0
    %767 = vmatpush1.msra.mxu0 0.0
    %768 = vmatprep.subr.mxu0 0.0
    %769 = vmatpush1.msra.mxu0 0.0
    %770 = vmatprep.subr.mxu0 0.0
    %771 = vmatpush1.msra.mxu0 0.0
    %772 = vmatprep.subr.mxu0 0.0
    %773 = vmatpush1.msra.mxu0 0.0
    %774 = vmatprep.subr.mxu0 0.0
    %775 = vmatpush1.msra.mxu0 0.0
    %776 = vmatprep.mubr.f32.mxu0 0.0
    %777 = vmatmul.mubr.f32.gmra.mrb[0].mxu0 %v707
    %v778 = vpop.f32.mrb[0].mxu0
    %v779 = vadd.f32 %v698, %v778
    %v780 = vpop.f32.mrb[0].mxu0
    %v781 = vadd.f32 %v698, %v780
    %782 = vmatprep.mubr.f32.mxu0 0.0
    %783 = vmatmul.mubr.f32.gmra.mrb[0].mxu0 %v710
    %v784 = vpop.f32.mrb[0].mxu0
    %v785 = vadd.f32 %v703, %v784
    %v786 = vpop.f32.mrb[0].mxu0
    %v787 = vadd.f32 %v703, %v786
    %788 = vdwg.mxu0
    %789 = vmatprep.subr.mxu0 %v682
    %790 = vmatpush1.msra.mxu0 %v681
    %791 = vmatprep.subr.mxu0 %v686
    %792 = vmatpush1.msra.mxu0 %v685
    %793 = vmatprep.subr.mxu0 %v690
    %794 = vmatpush1.msra.mxu0 %v689
    %795 = vmatprep.subr.mxu0 %v694
    %796 = vmatpush1.msra.mxu0 %v693
    %797 = vmatprep.subr.mxu0 0.0
    %798 = vmatpush1.msra.mxu0 0.0
    %799 = vmatprep.subr.mxu0 0.0
    %800 = vmatpush1.msra.mxu0 0.0
    %801 = vmatprep.subr.mxu0 0.0
    %802 = vmatpush1.msra.mxu0 0.0
    %803 = vmatprep.subr.mxu0 0.0
    %804 = vmatpush1.msra.mxu0 0.0
    %805 = vmatprep.subr.mxu0 0.0
    %806 = vmatpush1.msra.mxu0 0.0
    %807 = vmatprep.subr.mxu0 0.0
    %808 = vmatpush1.msra.mxu0 0.0
    %809 = vmatprep.subr.mxu0 0.0
    %810 = vmatpush1.msra.mxu0 0.0
    %811 = vmatprep.subr.mxu0 0.0
    %812 = vmatpush1.msra.mxu0 0.0
    %813 = vmatprep.subr.mxu0 0.0
    %814 = vmatpush1.msra.mxu0 0.0
    %815 = vmatprep.subr.mxu0 0.0
    %816 = vmatpush1.msra.mxu0 0.0
    %817 = vmatprep.subr.mxu0 0.0
    %818 = vmatpush1.msra.mxu0 0.0
    %819 = vmatprep.subr.mxu0 0.0
    %820 = vmatpush1.msra.mxu0 0.0
    %821 = vmatprep.subr.mxu0 0.0
    %822 = vmatpush1.msra.mxu0 0.0
    %823 = vmatprep.subr.mxu0 0.0
    %824 = vmatpush1.msra.mxu0 0.0
    %825 = vmatprep.subr.mxu0 0.0
    %826 = vmatpush1.msra.mxu0 0.0
    %827 = vmatprep.subr.mxu0 0.0
    %828 = vmatpush1.msra.mxu0 0.0
    %829 = vmatprep.subr.mxu0 0.0
    %830 = vmatpush1.msra.mxu0 0.0
    %831 = vmatprep.subr.mxu0 0.0
    %832 = vmatpush1.msra.mxu0 0.0
    %833 = vmatprep.subr.mxu0 0.0
    %834 = vmatpush1.msra.mxu0 0.0
    %835 = vmatprep.subr.mxu0 0.0
    %836 = vmatpush1.msra.mxu0 0.0
    %837 = vmatprep.subr.mxu0 0.0
    %838 = vmatpush1.msra.mxu0 0.0
    %839 = vmatprep.subr.mxu0 0.0
    %840 = vmatpush1.msra.mxu0 0.0
    %841 = vmatprep.subr.mxu0 0.0
    %842 = vmatpush1.msra.mxu0 0.0
    %843 = vmatprep.subr.mxu0 0.0
    %844 = vmatpush1.msra.mxu0 0.0
    %845 = vmatprep.subr.mxu0 0.0
    %846 = vmatpush1.msra.mxu0 0.0
    %847 = vmatprep.subr.mxu0 0.0
    %848 = vmatpush1.msra.mxu0 0.0
    %849 = vmatprep.subr.mxu0 0.0
    %850 = vmatpush1.msra.mxu0 0.0
    %851 = vmatprep.subr.mxu0 0.0
    %852 = vmatpush1.msra.mxu0 0.0
    %853 = vmatprep.mubr.f32.mxu0 0.0
    %854 = vmatmul.mubr.f32.gmra.mrb[0].mxu0 %v707
    %v855 = vpop.f32.mrb[0].mxu0
    %v856 = vadd.f32 %v698, %v855
    %v857 = vpop.f32.mrb[0].mxu0
    %v858 = vadd.f32 %v698, %v857
    %859 = vmatprep.mubr.f32.mxu0 0.0
    %860 = vmatmul.mubr.f32.gmra.mrb[0].mxu0 %v710
    %v861 = vpop.f32.mrb[0].mxu0
    %v862 = vadd.f32 %v703, %v861
    %v863 = vpop.f32.mrb[0].mxu0
    %v864 = vadd.f32 %v703, %v863
    %865 = vdwg.mxu0
    %v866 = vmax.f32 %v779, 0.0
    %v867 = vmax.f32 %v781, 0.0
    %v868 = vmax.f32 %v856, 0.0
    %v869 = vmax.f32 %v858, 0.0
    %v870 = vmax.f32 %v785, 0.0
    %v871 = vmax.f32 %v787, 0.0
    %v872 = vmax.f32 %v862, 0.0
    %v873 = vmax.f32 %v864, 0.0
    %875 = vset.pattern.permute.xlu0 0
    %876 = vperm.xlu0 %875, %v32
    %v877 = vpop.permute.xlu0 %876
    %v880 = vsel %vm488, %v23, 0
    %882 = vmatprep.subr.mxu0 %v867
    %883 = vmatpush1.msra.mxu0 %v866
    %884 = vmatprep.subr.mxu0 %v871
    %885 = vmatpush1.msra.mxu0 %v870
    %886 = vmatprep.subr.mxu0 0.0
    %887 = vmatpush1.msra.mxu0 0.0
    %888 = vmatprep.subr.mxu0 0.0
    %889 = vmatpush1.msra.mxu0 0.0
    %890 = vmatprep.subr.mxu0 0.0
    %891 = vmatpush1.msra.mxu0 0.0
    %892 = vmatprep.subr.mxu0 0.0
    %893 = vmatpush1.msra.mxu0 0.0
    %894 = vmatprep.subr.mxu0 0.0
    %895 = vmatpush1.msra.mxu0 0.0
    %896 = vmatprep.subr.mxu0 0.0
    %897 = vmatpush1.msra.mxu0 0.0
    %898 = vmatprep.subr.mxu0 0.0
    %899 = vmatpush1.msra.mxu0 0.0
    %900 = vmatprep.subr.mxu0 0.0
    %901 = vmatpush1.msra.mxu0 0.0
    %902 = vmatprep.subr.mxu0 0.0
    %903 = vmatpush1.msra.mxu0 0.0
    %904 = vmatprep.subr.mxu0 0.0
    %905 = vmatpush1.msra.mxu0 0.0
    %906 = vmatprep.subr.mxu0 0.0
    %907 = vmatpush1.msra.mxu0 0.0
    %908 = vmatprep.subr.mxu0 0.0
    %909 = vmatpush1.msra.mxu0 0.0
    %910 = vmatprep.subr.mxu0 0.0
    %911 = vmatpush1.msra.mxu0 0.0
    %912 = vmatprep.subr.mxu0 0.0
    %913 = vmatpush1.msra.mxu0 0.0
    %914 = vmatprep.subr.mxu0 0.0
    %915 = vmatpush1.msra.mxu0 0.0
    %916 = vmatprep.subr.mxu0 0.0
    %917 = vmatpush1.msra.mxu0 0.0
    %918 = vmatprep.subr.mxu0 0.0
    %919 = vmatpush1.msra.mxu0 0.0
    %920 = vmatprep.subr.mxu0 0.0
    %921 = vmatpush1.msra.mxu0 0.0
    %922 = vmatprep.subr.mxu0 0.0
    %923 = vmatpush1.msra.mxu0 0.0
    %924 = vmatprep.subr.mxu0 0.0
    %925 = vmatpush1.msra.mxu0 0.0
    %926 = vmatprep.subr.mxu0 0.0
    %927 = vmatpush1.msra.mxu0 0.0
    %928 = vmatprep.subr.mxu0 0.0
    %929 = vmatpush1.msra.mxu0 0.0
    %930 = vmatprep.subr.mxu0 0.0
    %931 = vmatpush1.msra.mxu0 0.0
    %932 = vmatprep.subr.mxu0 0.0
    %933 = vmatpush1.msra.mxu0 0.0
    %934 = vmatprep.subr.mxu0 0.0
    %935 = vmatpush1.msra.mxu0 0.0
    %936 = vmatprep.subr.mxu0 0.0
    %937 = vmatpush1.msra.mxu0 0.0
    %938 = vmatprep.subr.mxu0 0.0
    %939 = vmatpush1.msra.mxu0 0.0
    %940 = vmatprep.subr.mxu0 0.0
    %941 = vmatpush1.msra.mxu0 0.0
    %942 = vmatprep.subr.mxu0 0.0
    %943 = vmatpush1.msra.mxu0 0.0
    %944 = vmatprep.subr.mxu0 0.0
    %945 = vmatpush1.msra.mxu0 0.0
    %946 = vmatprep.mubr.f32.mxu0 0.0
    %947 = vmatmul.mubr.f32.gmra.mrb[0].mxu0 %v880
    %v948 = vpop.f32.mrb[0].mxu0
    %v949 = vadd.f32 %v877, %v948
    %v950 = vpop.f32.mrb[0].mxu0
    %v951 = vadd.f32 %v877, %v950
    %952 = vdwg.mxu0
    %953 = vmatprep.subr.mxu0 %v869
    %954 = vmatpush1.msra.mxu0 %v868
    %955 = vmatprep.subr.mxu0 %v873
    %956 = vmatpush1.msra.mxu0 %v872
    %957 = vmatprep.subr.mxu0 0.0
    %958 = vmatpush1.msra.mxu0 0.0
    %959 = vmatprep.subr.mxu0 0.0
    %960 = vmatpush1.msra.mxu0 0.0
    %961 = vmatprep.subr.mxu0 0.0
    %962 = vmatpush1.msra.mxu0 0.0
    %963 = vmatprep.subr.mxu0 0.0
    %964 = vmatpush1.msra.mxu0 0.0
    %965 = vmatprep.subr.mxu0 0.0
    %966 = vmatpush1.msra.mxu0 0.0
    %967 = vmatprep.subr.mxu0 0.0
    %968 = vmatpush1.msra.mxu0 0.0
    %969 = vmatprep.subr.mxu0 0.0
    %970 = vmatpush1.msra.mxu0 0.0
    %971 = vmatprep.subr.mxu0 0.0
    %972 = vmatpush1.msra.mxu0 0.0
    %973 = vmatprep.subr.mxu0 0.0
    %974 = vmatpush1.msra.mxu0 0.0
    %975 = vmatprep.subr.mxu0 0.0
    %976 = vmatpush1.msra.mxu0 0.0
    %977 = vmatprep.subr.mxu0 0.0
    %978 = vmatpush1.msra.mxu0 0.0
    %979 = vmatprep.subr.mxu0 0.0
    %980 = vmatpush1.msra.mxu0 0.0
    %981 = vmatprep.subr.mxu0 0.0
    %982 = vmatpush1.msra.mxu0 0.0
    %983 = vmatprep.subr.mxu0 0.0
    %984 = vmatpush1.msra.mxu0 0.0
    %985 = vmatprep.subr.mxu0 0.0
    %986 = vmatpush1.msra.mxu0 0.0
    %987 = vmatprep.subr.mxu0 0.0
    %988 = vmatpush1.msra.mxu0 0.0
    %989 = vmatprep.subr.mxu0 0.0
    %990 = vmatpush1.msra.mxu0 0.0
    %991 = vmatprep.subr.mxu0 0.0
    %992 = vmatpush1.msra.mxu0 0.0
    %993 = vmatprep.subr.mxu0 0.0
    %994 = vmatpush1.msra.mxu0 0.0
    %995 = vmatprep.subr.mxu0 0.0
    %996 = vmatpush1.msra.mxu0 0.0
    %997 = vmatprep.subr.mxu0 0.0
    %998 = vmatpush1.msra.mxu0 0.0
    %999 = vmatprep.subr.mxu0 0.0
    %1000 = vmatpush1.msra.mxu0 0.0
    %1001 = vmatprep.subr.mxu0 0.0
    %1002 = vmatpush1.msra.mxu0 0.0
    %1003 = vmatprep.subr.mxu0 0.0
    %1004 = vmatpush1.msra.mxu0 0.0
    %1005 = vmatprep.subr.mxu0 0.0
    %1006 = vmatpush1.msra.mxu0 0.0
    %1007 = vmatprep.subr.mxu0 0.0
    %1008 = vmatpush1.msra.mxu0 0.0
    %1009 = vmatprep.subr.mxu0 0.0
    %1010 = vmatpush1.msra.mxu0 0.0
    %1011 = vmatprep.subr.mxu0 0.0
    %1012 = vmatpush1.msra.mxu0 0.0
    %1013 = vmatprep.subr.mxu0 0.0
    %1014 = vmatpush1.msra.mxu0 0.0
    %1015 = vmatprep.subr.mxu0 0.0
    %1016 = vmatpush1.msra.mxu0 0.0
    %1017 = vmatprep.mubr.f32.mxu0 0.0
    %1018 = vmatmul.mubr.f32.gmra.mrb[0].mxu0 %v880
    %v1019 = vpop.f32.mrb[0].mxu0
    %v1020 = vadd.f32 %v877, %v1019
    %v1021 = vpop.f32.mrb[0].mxu0
    %v1022 = vadd.f32 %v877, %v1021
    %1023 = vdwg.mxu0
    %v1028 = vcombine.low %v949, %v951
    %v1029 = vcombine.low %v1020, %v1022
    %v1031 = vunpack.c.l.s4 1966171168
    %v1032 = vunpack.c.0.s8 %v1031
    %v1033 = vlaneseq
    %v1034 = vshrl.u32 %v1033, 7
    %v1035 = vsub.s32 %v1032, %v1034
    %v1036 = vrot.slane %v1028, %v1035
    %v1038 = vunpack.c.l.s4 1966171168
    %v1039 = vunpack.c.0.s8 %v1038
    %v1040 = vlaneseq
    %v1041 = vshrl.u32 %v1040, 7
    %v1042 = vsub.s32 %v1039, %v1041
    %v1043 = vrot.slane %v1029, %v1042
    %v1044 = vcombine.low %v1036, %v1043
    %v1046 = vunpack.c.l.s4 1966171168
    %v1047 = vunpack.c.0.s8 %v1046
    %v1048 = vlaneseq
    %v1049 = vshrl.u32 %v1048, 7
    %v1050 = vsub.s32 %v1047, %v1049
    %v1051 = vrot.slane %v1044, %v1050
    %v1053 = vlaneseq
    %vm1054 = vcmp.ge.s32.totalorder %v1053, 0
    %vm1055 = vcmp.lt.s32.totalorder %v1053, 512
    %vm1056 = vmand %vm1054, %vm1055
    %1057 = vst.msk [vmem:[#allocation2] sm:$0xf] %vm1056, %v1051
    // Predicated region
    $region14: #{tpu_custom_call.1} parent=1 // pred_check
      _
    $region15: #{tpu_custom_call.1} parent=1 // pred_check_branch
      %1059 = sbr.rel (0) target = $region17
    $region16: #{tpu_custom_call.1} parent=1 // pred_region
      %s1061 = ssub.s32 64, 64
      %1062 = vsyncadd [#allocation3], %s1061
      %s1064 = sshll.u32 [#allocation2], 4
      %s1065 = int_to_ptr.vmem [resolvable:$true] %s1064
      %1067 = dma.vmem_to_hbm [thread:$0]  %s1065, 64, %s3, [#allocation3]
    $region17: #{tpu_custom_call.1} parent=1 // pred_fallthru
      _
    // Predicated region
    $region18: #{tpu_custom_call.1} parent=1 // pred_check
      _
    $region19: #{tpu_custom_call.1} parent=1 // pred_check_branch
      %1069 = sbr.rel (0) target = $region21
    $region20: #{tpu_custom_call.1} parent=1 // pred_region
      %1070 = dma.done [#allocation3], 64
    $region21: #{tpu_custom_call.1} parent=1 // pred_fallthru
      _
    %1071 = vsyncpa [#allocation3], 1

</llo_original>
